<compile_context>
chip_gen: v5e
topology: v5e:2x2
jax: 0.10.0
libtpu: 0.0.40
codegen_flags: <defaults>
</compile_context>

<pallas_src>
import jax
import jax.numpy as jnp
from jax.experimental import pallas as pl
from jax.experimental.pallas import tpu as pltpu


def _round_up(x, m):
    return ((x + m - 1) // m) * m


def mlp2_kernel(x_ref, w1_ref, b1_ref, w23_ref, b3_ref, o_ref):
    # fc1 (+bias) + ReLU; f32 accumulation on the MXU.
    h1 = jnp.dot(x_ref[...], w1_ref[...], preferred_element_type=jnp.float32)
    h1 = jnp.maximum(h1 + b1_ref[...], 0.0)                 # (TM, 32) + (1, 32)
    # Folded fc2 @ fc3 (+ fc3 bias); lane-dense padded output columns.
    out = jnp.dot(h1, w23_ref[...], preferred_element_type=jnp.float32)
    o_ref[...] = (out + b3_ref[...]).astype(o_ref.dtype)    # (TM, Npad) + (1, Npad)


def mlp2_forward(x, w1, b1, w2, w3, b3, input_size, num_classes,
                 *, matmul_dtype=jnp.float32, block_m=512):
    # Flatten exactly like x.view(-1, input_size).
    x2d = x.reshape(-1, input_size).astype(jnp.float32)
    batch = x2d.shape[0]
    hidden1 = w1.shape[1]                                   # 32

    # (1) Fold fc2 @ fc3 into a single (32, num_classes) weight (exact linear algebra,
    #     computed once outside the kernel).
    w23 = w2.astype(jnp.float32) @ w3.astype(jnp.float32)

    # (2) Lane-dense output: pad the class dim up to a multiple of 128.
    n_pad = _round_up(num_classes, 128)
    w23p = jnp.pad(w23, ((0, 0), (0, n_pad - num_classes)))
    b3p = jnp.pad(b3.reshape(1, -1).astype(jnp.float32),
                  ((0, 0), (0, n_pad - num_classes)))

    # (3) Batch-tiled grid: row tile is a multiple of 8 sublanes, capped at
    #     block_m. At block_m=512 the fp32 working set (x tile 2 MiB x 2 bufs,
    #     out tile 0.25 MiB x 2 bufs, ~150 KiB resident weights) fits the
    #     default scoped VMEM on every generation, so no vmem_limit_bytes needed.
    tm = min(block_m, _round_up(batch, 8))
    bpad = _round_up(batch, tm)
    if bpad != batch:
        x2d = jnp.pad(x2d, ((0, bpad - batch), (0, 0)))

    # (4) Optional bf16 operands for the K=input_size matmul (v6e/v7x); the
    #     accumulation, bias adds and ReLU stay in f32 inside the kernel.
    xk = x2d.astype(matmul_dtype)
    w1k = w1.astype(matmul_dtype)
    b1k = b1.reshape(1, -1).astype(jnp.float32)

    grid = (bpad // tm,)
    out_padded = pl.pallas_call(
        mlp2_kernel,
        out_shape=jax.ShapeDtypeStruct((bpad, n_pad), jnp.float32),
        grid=grid,
        in_specs=[
            pl.BlockSpec((tm, input_size), lambda i: (i, 0)),       # x batch tile
            pl.BlockSpec((input_size, hidden1), lambda i: (0, 0)),  # w1 (resident)
            pl.BlockSpec((1, hidden1), lambda i: (0, 0)),           # b1
            pl.BlockSpec((hidden1, n_pad), lambda i: (0, 0)),       # folded w2 @ w3
            pl.BlockSpec((1, n_pad), lambda i: (0, 0)),             # b3 (padded)
        ],
        out_specs=pl.BlockSpec((tm, n_pad), lambda i: (i, 0)),
        compiler_params=pltpu.CompilerParams(
            dimension_semantics=("parallel",),                      # megacore / v7x 2 TCs
        ),
    )(xk, w1k, b1k, w23p, b3p)

    return out_padded[:batch, :num_classes]


def init_params(key, input_size, num_classes):
    # Deterministic synthetic init (uniform, roughly like torch default scale).
    k1, k2, k3, k4, k5 = jax.random.split(key, 5)
    s1 = 1.0 / jnp.sqrt(input_size)
    s2 = 1.0 / jnp.sqrt(32.0)
    s3 = 1.0 / jnp.sqrt(64.0)
    w1 = jax.random.uniform(k1, (input_size, 32), jnp.float32, -s1, s1)
    b1 = jax.random.uniform(k2, (1, 32), jnp.float32, -s1, s1)
    w2 = jax.random.uniform(k3, (32, 64), jnp.float32, -s2, s2)       # fc2: bias=False
    w3 = jax.random.uniform(k4, (64, num_classes), jnp.float32, -s3, s3)
    b3 = jax.random.uniform(k5, (1, num_classes), jnp.float32, -s3, s3)
    return w1, b1, w2, w3, b3


if __name__ == "__main__":
    key = jax.random.PRNGKey(0)
    kx, kp = jax.random.split(key)

    # Input mimics a small image batch: (B=2, C=4, H=16, W=16) -> input_size=1024
    B, C, H, W = 2, 4, 16, 16
    input_size = C * H * W
    num_classes = 10

    x = jax.random.normal(kx, (B, C, H, W), jnp.float32)
    w1, b1, w2, w3, b3 = init_params(kp, input_size, num_classes)

    # --- default f32 path: preserves the original fp32 module semantics ---
    out = mlp2_forward(x, w1, b1, w2, w3, b3, input_size, num_classes)
    out = jax.block_until_ready(out)

    x2d = x.reshape(-1, input_size)
    ref = jnp.maximum(x2d @ w1 + b1, 0.0) @ w2 @ w3 + b3   # torch-order reference
    assert out.shape == (B, num_classes)
    assert jnp.allclose(out, ref, atol=1e-4, rtol=1e-4)

    # --- bf16-operand path (v6e/v7x recommendation), f32 accumulation ---
    out_bf16 = mlp2_forward(x, w1, b1, w2, w3, b3, input_size, num_classes,
                            matmul_dtype=jnp.bfloat16)
    out_bf16 = jax.block_until_ready(out_bf16)

    # Tight check vs a reference that applies the same bf16 rounding to x/w1
    # (only f32 accumulation order differs).
    x16 = x2d.astype(jnp.bfloat16).astype(jnp.float32)
    w116 = w1.astype(jnp.bfloat16).astype(jnp.float32)
    ref16 = jnp.maximum(x16 @ w116 + b1, 0.0) @ (w2 @ w3) + b3
    assert jnp.allclose(out_bf16, ref16, atol=1e-4, rtol=1e-4)
    # Versus the full-f32 module: tolerance explicitly loosened for the
    # bf16-rounded K=1024 reduction (documented, not silent).
    assert jnp.allclose(out_bf16, ref, atol=5e-2, rtol=5e-2)

    print("KERNEL_OK")
</pallas_src>

<mosaic_0001>
module attributes {stable_mosaic.version = 11 : i64} {
  func.func @mlp2_kernel(%arg0: i32, %arg1: memref<8x1024xf32, #tpu.memory_space<vmem>>, %arg2: memref<1024x32xf32, #tpu.memory_space<vmem>>, %arg3: memref<1x32xf32, #tpu.memory_space<vmem>>, %arg4: memref<32x128xf32, #tpu.memory_space<vmem>>, %arg5: memref<1x128xf32, #tpu.memory_space<vmem>>, %arg6: memref<8x128xf32, #tpu.memory_space<vmem>>) attributes {dimension_semantics = [#tpu.dimension_semantics<parallel>], iteration_bounds = array<i64: 1>, scalar_prefetch = 0 : i64, scratch_operands = 0 : i64, tpu.core_type = #tpu.core_type<tc>, window_params = [{transform_indices = @transform_0, window_bounds = array<i64: 8, 1024>}, {pipeline_mode = #tpu.pipeline_mode<synchronous>, transform_indices = @transform_1, window_bounds = array<i64: 1024, 32>}, {pipeline_mode = #tpu.pipeline_mode<synchronous>, transform_indices = @transform_2, window_bounds = array<i64: 1, 32>}, {pipeline_mode = #tpu.pipeline_mode<synchronous>, transform_indices = @transform_3, window_bounds = array<i64: 32, 128>}, {pipeline_mode = #tpu.pipeline_mode<synchronous>, transform_indices = @transform_4, window_bounds = array<i64: 1, 128>}, {transform_indices = @transform_5, window_bounds = array<i64: 8, 128>}]} {
    %c0 = arith.constant 0 : index
    %c0_0 = arith.constant 0 : index
    %0 = vector.load %arg1[%c0, %c0_0] : memref<8x1024xf32, #tpu.memory_space<vmem>>, vector<8x1024xf32>
    %c0_1 = arith.constant 0 : index
    %c0_2 = arith.constant 0 : index
    %1 = vector.load %arg2[%c0_1, %c0_2] : memref<1024x32xf32, #tpu.memory_space<vmem>>, vector<1024x32xf32>
    %cst = arith.constant dense<0.000000e+00> : vector<8x32xf32>
    %2 = tpu.matmul %0, %1, %cst {dimension_numbers = #tpu.dot_dimension_numbers<[1], [0], [0], [1], [0, 0, 1, 1], [], []>} : vector<8x1024xf32>, vector<1024x32xf32>, vector<8x32xf32> -> vector<8x32xf32>
    %c0_3 = arith.constant 0 : index
    %c0_4 = arith.constant 0 : index
    %3 = vector.load %arg3[%c0_3, %c0_4] : memref<1x32xf32, #tpu.memory_space<vmem>>, vector<1x32xf32>
    %4 = vector.broadcast %3 : vector<1x32xf32> to vector<8x32xf32>
    %5 = arith.addf %2, %4 : vector<8x32xf32>
    %cst_5 = arith.constant 0.000000e+00 : f32
    %6 = vector.broadcast %cst_5 : f32 to vector<8x32xf32>
    %7 = arith.maximumf %5, %6 : vector<8x32xf32>
    %c0_6 = arith.constant 0 : index
    %c0_7 = arith.constant 0 : index
    %8 = vector.load %arg4[%c0_6, %c0_7] : memref<32x128xf32, #tpu.memory_space<vmem>>, vector<32x128xf32>
    %cst_8 = arith.constant dense<0.000000e+00> : vector<8x128xf32>
    %9 = tpu.matmul %7, %8, %cst_8 {dimension_numbers = #tpu.dot_dimension_numbers<[1], [0], [0], [1], [0, 0, 1, 1], [], []>} : vector<8x32xf32>, vector<32x128xf32>, vector<8x128xf32> -> vector<8x128xf32>
    %c0_9 = arith.constant 0 : index
    %c0_10 = arith.constant 0 : index
    %10 = vector.load %arg5[%c0_9, %c0_10] : memref<1x128xf32, #tpu.memory_space<vmem>>, vector<1x128xf32>
    %11 = vector.broadcast %10 : vector<1x128xf32> to vector<8x128xf32>
    %12 = arith.addf %9, %11 : vector<8x128xf32>
    %c0_11 = arith.constant 0 : index
    %c0_12 = arith.constant 0 : index
    %13 = vector.load %arg6[%c0_11, %c0_12] : memref<8x128xf32, #tpu.memory_space<vmem>>, vector<8x128xf32>
    tpu.vector_store %arg6[%c0_11, %c0_12], %12 {strides = array<i32>} : memref<8x128xf32, #tpu.memory_space<vmem>>, vector<8x128xf32>,
    return
  }
  func.func @transform_0(%arg0: i32) -> (i32, i32) {
    %c0_i32 = arith.constant 0 : i32
    %c0_i32_0 = arith.constant 0 : i32
    return %arg0, %c0_i32 : i32, i32
  }
  func.func @transform_1(%arg0: i32) -> (i32, i32) {
    %c0_i32 = arith.constant 0 : i32
    %c0_i32_0 = arith.constant 0 : i32
    %c0_i32_1 = arith.constant 0 : i32
    return %c0_i32, %c0_i32_0 : i32, i32
  }
  func.func @transform_2(%arg0: i32) -> (i32, i32) {
    %c0_i32 = arith.constant 0 : i32
    %c0_i32_0 = arith.constant 0 : i32
    %c0_i32_1 = arith.constant 0 : i32
    return %c0_i32, %c0_i32_0 : i32, i32
  }
  func.func @transform_3(%arg0: i32) -> (i32, i32) {
    %c0_i32 = arith.constant 0 : i32
    %c0_i32_0 = arith.constant 0 : i32
    %c0_i32_1 = arith.constant 0 : i32
    return %c0_i32, %c0_i32_0 : i32, i32
  }
  func.func @transform_4(%arg0: i32) -> (i32, i32) {
    %c0_i32 = arith.constant 0 : i32
    %c0_i32_0 = arith.constant 0 : i32
    %c0_i32_1 = arith.constant 0 : i32
    return %c0_i32, %c0_i32_0 : i32, i32
  }
  func.func @transform_5(%arg0: i32) -> (i32, i32) {
    %c0_i32 = arith.constant 0 : i32
    %c0_i32_0 = arith.constant 0 : i32
    return %arg0, %c0_i32 : i32, i32
  }
}

</mosaic_0001>

<llo_original>
// kernel: tpu_custom_call.1
$region0: #{tpu_custom_call.1}
  #allocation0 [shape = 'u32[]', space=smem, size = 0x4, offset = 0x4, fixed_abs, tag = 'smem constant byte address 0x4 - core index']
  #allocation1 [shape = 'u32[72,128]{1,0:T(1,128)}', space=vmem, size = 0x9000, scoped, tag = 'internal scratch']
  %s0 = inlined_call_operand.vmem [shape: f32[8,1024], index: 0, kind: input, shape index: {}]
  %s1 = inlined_call_operand.vmem [shape: f32[1024,32], index: 1, kind: input, shape index: {}]
  %s2 = inlined_call_operand.vmem [shape: f32[1,32], index: 2, kind: input, shape index: {}]
  %s3 = inlined_call_operand.vmem [shape: f32[32,128], index: 3, kind: input, shape index: {}]
  %s4 = inlined_call_operand.vmem [shape: f32[1,128], index: 4, kind: input, shape index: {}]
  %s5 = inlined_call_operand.hbm [shape: f32[8,128], index: 5, kind: output, shape index: {}]
  %s6 = sld [smem:[#allocation0]]
  $region30: #{tpu_custom_call.1} parent=0
    _
  %s8 = ssub.s32 1, %s6
  %s9 = scalar_select 0, %s8, %s6
  $region1: #{tpu_custom_call.1} parent=0
    #allocation2 [shape = 'u8[4096]{0}', space=vmem, size = 0x1000, scoped, tag = 'output window, operand 0, single buffered']
    #allocation3 [shape = 's32[1]{0}', space=sflag, size = 0x4, scoped, tag = 'scoped memory for tpu_custom_call.1']
    %10 = vsyncpa [#allocation3], 0
    // Predicated region
    $region2: #{tpu_custom_call.1} parent=1 // pred_check
      _
    $region3: #{tpu_custom_call.1} parent=1 // pred_check_branch
      %12 = sbr.rel (0) target = $region5
    $region4: #{tpu_custom_call.1} parent=1 // pred_region
      _
    $region5: #{tpu_custom_call.1} parent=1 // pred_fallthru
      _
    // Predicated region
    $region6: #{tpu_custom_call.1} parent=1 // pred_check
      _
    $region7: #{tpu_custom_call.1} parent=1 // pred_check_branch
      %14 = sbr.rel (0) target = $region9
    $region8: #{tpu_custom_call.1} parent=1 // pred_region
      _
    $region9: #{tpu_custom_call.1} parent=1 // pred_fallthru
      _
    // Predicated region
    $region10: #{tpu_custom_call.1} parent=1 // pred_check
      _
    $region11: #{tpu_custom_call.1} parent=1 // pred_check_branch
      %16 = sbr.rel (0) target = $region13
    $region12: #{tpu_custom_call.1} parent=1 // pred_region
      _
    $region13: #{tpu_custom_call.1} parent=1 // pred_fallthru
      _
    // Predicated region
    $region14: #{tpu_custom_call.1} parent=1 // pred_check
      _
    $region15: #{tpu_custom_call.1} parent=1 // pred_check_branch
      %18 = sbr.rel (0) target = $region17
    $region16: #{tpu_custom_call.1} parent=1 // pred_region
      _
    $region17: #{tpu_custom_call.1} parent=1 // pred_fallthru
      _
    // Predicated region
    $region18: #{tpu_custom_call.1} parent=1 // pred_check
      _
    $region19: #{tpu_custom_call.1} parent=1 // pred_check_branch
      %20 = sbr.rel (0) target = $region21
    $region20: #{tpu_custom_call.1} parent=1 // pred_region
      _
    $region21: #{tpu_custom_call.1} parent=1 // pred_fallthru
      _
    %v21 = vld [vmem:[%s0] sm:$0xff]
    %v22 = vld [vmem:[%s0 + $0x8] sm:$0xff]
    %v23 = vld [vmem:[%s0 + $0x10] sm:$0xff]
    %v24 = vld [vmem:[%s0 + $0x18] sm:$0xff]
    %v25 = vld [vmem:[%s0 + $0x20] sm:$0xff]
    %v26 = vld [vmem:[%s0 + $0x28] sm:$0xff]
    %v27 = vld [vmem:[%s0 + $0x30] sm:$0xff]
    %v28 = vld [vmem:[%s0 + $0x38] sm:$0xff]
    %v29 = vld [vmem:[%s1] sm:$0xff]
    %v30 = vld [vmem:[%s1 + $0x8] sm:$0xff]
    %v31 = vld [vmem:[%s1 + $0x10] sm:$0xff]
    %v32 = vld [vmem:[%s1 + $0x18] sm:$0xff]
    %v33 = vld [vmem:[%s1 + $0x20] sm:$0xff]
    %v34 = vld [vmem:[%s1 + $0x28] sm:$0xff]
    %v35 = vld [vmem:[%s1 + $0x30] sm:$0xff]
    %v36 = vld [vmem:[%s1 + $0x38] sm:$0xff]
    %v37 = vld [vmem:[%s1 + $0x40] sm:$0xff]
    %v38 = vld [vmem:[%s1 + $0x48] sm:$0xff]
    %v39 = vld [vmem:[%s1 + $0x50] sm:$0xff]
    %v40 = vld [vmem:[%s1 + $0x58] sm:$0xff]
    %v41 = vld [vmem:[%s1 + $0x60] sm:$0xff]
    %v42 = vld [vmem:[%s1 + $0x68] sm:$0xff]
    %v43 = vld [vmem:[%s1 + $0x70] sm:$0xff]
    %v44 = vld [vmem:[%s1 + $0x78] sm:$0xff]
    %v45 = vld [vmem:[%s1 + $0x80] sm:$0xff]
    %v46 = vld [vmem:[%s1 + $0x88] sm:$0xff]
    %v47 = vld [vmem:[%s1 + $0x90] sm:$0xff]
    %v48 = vld [vmem:[%s1 + $0x98] sm:$0xff]
    %v49 = vld [vmem:[%s1 + $0xa0] sm:$0xff]
    %v50 = vld [vmem:[%s1 + $0xa8] sm:$0xff]
    %v51 = vld [vmem:[%s1 + $0xb0] sm:$0xff]
    %v52 = vld [vmem:[%s1 + $0xb8] sm:$0xff]
    %v53 = vld [vmem:[%s1 + $0xc0] sm:$0xff]
    %v54 = vld [vmem:[%s1 + $0xc8] sm:$0xff]
    %v55 = vld [vmem:[%s1 + $0xd0] sm:$0xff]
    %v56 = vld [vmem:[%s1 + $0xd8] sm:$0xff]
    %v57 = vld [vmem:[%s1 + $0xe0] sm:$0xff]
    %v58 = vld [vmem:[%s1 + $0xe8] sm:$0xff]
    %v59 = vld [vmem:[%s1 + $0xf0] sm:$0xff]
    %v60 = vld [vmem:[%s1 + $0xf8] sm:$0xff]
    %v61 = vld [vmem:[%s1 + $0x100] sm:$0xff]
    %v62 = vld [vmem:[%s1 + $0x108] sm:$0xff]
    %v63 = vld [vmem:[%s1 + $0x110] sm:$0xff]
    %v64 = vld [vmem:[%s1 + $0x118] sm:$0xff]
    %v65 = vld [vmem:[%s1 + $0x120] sm:$0xff]
    %v66 = vld [vmem:[%s1 + $0x128] sm:$0xff]
    %v67 = vld [vmem:[%s1 + $0x130] sm:$0xff]
    %v68 = vld [vmem:[%s1 + $0x138] sm:$0xff]
    %v69 = vld [vmem:[%s1 + $0x140] sm:$0xff]
    %v70 = vld [vmem:[%s1 + $0x148] sm:$0xff]
    %v71 = vld [vmem:[%s1 + $0x150] sm:$0xff]
    %v72 = vld [vmem:[%s1 + $0x158] sm:$0xff]
    %v73 = vld [vmem:[%s1 + $0x160] sm:$0xff]
    %v74 = vld [vmem:[%s1 + $0x168] sm:$0xff]
    %v75 = vld [vmem:[%s1 + $0x170] sm:$0xff]
    %v76 = vld [vmem:[%s1 + $0x178] sm:$0xff]
    %v77 = vld [vmem:[%s1 + $0x180] sm:$0xff]
    %v78 = vld [vmem:[%s1 + $0x188] sm:$0xff]
    %v79 = vld [vmem:[%s1 + $0x190] sm:$0xff]
    %v80 = vld [vmem:[%s1 + $0x198] sm:$0xff]
    %v81 = vld [vmem:[%s1 + $0x1a0] sm:$0xff]
    %v82 = vld [vmem:[%s1 + $0x1a8] sm:$0xff]
    %v83 = vld [vmem:[%s1 + $0x1b0] sm:$0xff]
    %v84 = vld [vmem:[%s1 + $0x1b8] sm:$0xff]
    %v85 = vld [vmem:[%s1 + $0x1c0] sm:$0xff]
    %v86 = vld [vmem:[%s1 + $0x1c8] sm:$0xff]
    %v87 = vld [vmem:[%s1 + $0x1d0] sm:$0xff]
    %v88 = vld [vmem:[%s1 + $0x1d8] sm:$0xff]
    %v89 = vld [vmem:[%s1 + $0x1e0] sm:$0xff]
    %v90 = vld [vmem:[%s1 + $0x1e8] sm:$0xff]
    %v91 = vld [vmem:[%s1 + $0x1f0] sm:$0xff]
    %v92 = vld [vmem:[%s1 + $0x1f8] sm:$0xff]
    %v93 = vld [vmem:[%s1 + $0x200] sm:$0xff]
    %v94 = vld [vmem:[%s1 + $0x208] sm:$0xff]
    %v95 = vld [vmem:[%s1 + $0x210] sm:$0xff]
    %v96 = vld [vmem:[%s1 + $0x218] sm:$0xff]
    %v97 = vld [vmem:[%s1 + $0x220] sm:$0xff]
    %v98 = vld [vmem:[%s1 + $0x228] sm:$0xff]
    %v99 = vld [vmem:[%s1 + $0x230] sm:$0xff]
    %v100 = vld [vmem:[%s1 + $0x238] sm:$0xff]
    %v101 = vld [vmem:[%s1 + $0x240] sm:$0xff]
    %v102 = vld [vmem:[%s1 + $0x248] sm:$0xff]
    %v103 = vld [vmem:[%s1 + $0x250] sm:$0xff]
    %v104 = vld [vmem:[%s1 + $0x258] sm:$0xff]
    %v105 = vld [vmem:[%s1 + $0x260] sm:$0xff]
    %v106 = vld [vmem:[%s1 + $0x268] sm:$0xff]
    %v107 = vld [vmem:[%s1 + $0x270] sm:$0xff]
    %v108 = vld [vmem:[%s1 + $0x278] sm:$0xff]
    %v109 = vld [vmem:[%s1 + $0x280] sm:$0xff]
    %v110 = vld [vmem:[%s1 + $0x288] sm:$0xff]
    %v111 = vld [vmem:[%s1 + $0x290] sm:$0xff]
    %v112 = vld [vmem:[%s1 + $0x298] sm:$0xff]
    %v113 = vld [vmem:[%s1 + $0x2a0] sm:$0xff]
    %v114 = vld [vmem:[%s1 + $0x2a8] sm:$0xff]
    %v115 = vld [vmem:[%s1 + $0x2b0] sm:$0xff]
    %v116 = vld [vmem:[%s1 + $0x2b8] sm:$0xff]
    %v117 = vld [vmem:[%s1 + $0x2c0] sm:$0xff]
    %v118 = vld [vmem:[%s1 + $0x2c8] sm:$0xff]
    %v119 = vld [vmem:[%s1 + $0x2d0] sm:$0xff]
    %v120 = vld [vmem:[%s1 + $0x2d8] sm:$0xff]
    %v121 = vld [vmem:[%s1 + $0x2e0] sm:$0xff]
    %v122 = vld [vmem:[%s1 + $0x2e8] sm:$0xff]
    %v123 = vld [vmem:[%s1 + $0x2f0] sm:$0xff]
    %v124 = vld [vmem:[%s1 + $0x2f8] sm:$0xff]
    %v125 = vld [vmem:[%s1 + $0x300] sm:$0xff]
    %v126 = vld [vmem:[%s1 + $0x308] sm:$0xff]
    %v127 = vld [vmem:[%s1 + $0x310] sm:$0xff]
    %v128 = vld [vmem:[%s1 + $0x318] sm:$0xff]
    %v129 = vld [vmem:[%s1 + $0x320] sm:$0xff]
    %v130 = vld [vmem:[%s1 + $0x328] sm:$0xff]
    %v131 = vld [vmem:[%s1 + $0x330] sm:$0xff]
    %v132 = vld [vmem:[%s1 + $0x338] sm:$0xff]
    %v133 = vld [vmem:[%s1 + $0x340] sm:$0xff]
    %v134 = vld [vmem:[%s1 + $0x348] sm:$0xff]
    %v135 = vld [vmem:[%s1 + $0x350] sm:$0xff]
    %v136 = vld [vmem:[%s1 + $0x358] sm:$0xff]
    %v137 = vld [vmem:[%s1 + $0x360] sm:$0xff]
    %v138 = vld [vmem:[%s1 + $0x368] sm:$0xff]
    %v139 = vld [vmem:[%s1 + $0x370] sm:$0xff]
    %v140 = vld [vmem:[%s1 + $0x378] sm:$0xff]
    %v141 = vld [vmem:[%s1 + $0x380] sm:$0xff]
    %v142 = vld [vmem:[%s1 + $0x388] sm:$0xff]
    %v143 = vld [vmem:[%s1 + $0x390] sm:$0xff]
    %v144 = vld [vmem:[%s1 + $0x398] sm:$0xff]
    %v145 = vld [vmem:[%s1 + $0x3a0] sm:$0xff]
    %v146 = vld [vmem:[%s1 + $0x3a8] sm:$0xff]
    %v147 = vld [vmem:[%s1 + $0x3b0] sm:$0xff]
    %v148 = vld [vmem:[%s1 + $0x3b8] sm:$0xff]
    %v149 = vld [vmem:[%s1 + $0x3c0] sm:$0xff]
    %v150 = vld [vmem:[%s1 + $0x3c8] sm:$0xff]
    %v151 = vld [vmem:[%s1 + $0x3d0] sm:$0xff]
    %v152 = vld [vmem:[%s1 + $0x3d8] sm:$0xff]
    %v153 = vld [vmem:[%s1 + $0x3e0] sm:$0xff]
    %v154 = vld [vmem:[%s1 + $0x3e8] sm:$0xff]
    %v155 = vld [vmem:[%s1 + $0x3f0] sm:$0xff]
    %v156 = vld [vmem:[%s1 + $0x3f8] sm:$0xff]
    %v157 = vld [vmem:[%s2] sm:$0x1]
    %v159 = vperm.slane %v157, 0
    %161 = vmatpush.msra.mxu0 %v44
    %162 = vmatpush.msra.mxu0 %v43
    %163 = vmatpush.msra.mxu0 %v42
    %164 = vmatpush.msra.mxu0 %v41
    %165 = vmatpush.msra.mxu0 %v40
    %166 = vmatpush.msra.mxu0 %v39
    %167 = vmatpush.msra.mxu0 %v38
    %168 = vmatpush.msra.mxu0 %v37
    %169 = vmatpush.msra.mxu0 %v36
    %170 = vmatpush.msra.mxu0 %v35
    %171 = vmatpush.msra.mxu0 %v34
    %172 = vmatpush.msra.mxu0 %v33
    %173 = vmatpush.msra.mxu0 %v32
    %174 = vmatpush.msra.mxu0 %v31
    %175 = vmatpush.msra.mxu0 %v30
    %176 = vmatpush.msra.mxu0 %v29
    %177 = vmatmul.f32.gmra.mxu0 %v21
    %v178 = vpop.f32.mrf.mxu0
    %v179 = vadd.f32 %v159, %v178
    %180 = vdwg.mxu0
    %181 = vmatpush.msra.mxu0 %v60
    %182 = vmatpush.msra.mxu0 %v59
    %183 = vmatpush.msra.mxu0 %v58
    %184 = vmatpush.msra.mxu0 %v57
    %185 = vmatpush.msra.mxu0 %v56
    %186 = vmatpush.msra.mxu0 %v55
    %187 = vmatpush.msra.mxu0 %v54
    %188 = vmatpush.msra.mxu0 %v53
    %189 = vmatpush.msra.mxu0 %v52
    %190 = vmatpush.msra.mxu0 %v51
    %191 = vmatpush.msra.mxu0 %v50
    %192 = vmatpush.msra.mxu0 %v49
    %193 = vmatpush.msra.mxu0 %v48
    %194 = vmatpush.msra.mxu0 %v47
    %195 = vmatpush.msra.mxu0 %v46
    %196 = vmatpush.msra.mxu0 %v45
    %197 = vmatmul.f32.gmra.mxu0 %v22
    %v198 = vpop.f32.mrf.mxu0
    %v199 = vadd.f32 %v179, %v198
    %200 = vdwg.mxu0
    %201 = vmatpush.msra.mxu0 %v76
    %202 = vmatpush.msra.mxu0 %v75
    %203 = vmatpush.msra.mxu0 %v74
    %204 = vmatpush.msra.mxu0 %v73
    %205 = vmatpush.msra.mxu0 %v72
    %206 = vmatpush.msra.mxu0 %v71
    %207 = vmatpush.msra.mxu0 %v70
    %208 = vmatpush.msra.mxu0 %v69
    %209 = vmatpush.msra.mxu0 %v68
    %210 = vmatpush.msra.mxu0 %v67
    %211 = vmatpush.msra.mxu0 %v66
    %212 = vmatpush.msra.mxu0 %v65
    %213 = vmatpush.msra.mxu0 %v64
    %214 = vmatpush.msra.mxu0 %v63
    %215 = vmatpush.msra.mxu0 %v62
    %216 = vmatpush.msra.mxu0 %v61
    %217 = vmatmul.f32.gmra.mxu0 %v23
    %v218 = vpop.f32.mrf.mxu0
    %v219 = vadd.f32 %v199, %v218
    %220 = vdwg.mxu0
    %221 = vmatpush.msra.mxu0 %v92
    %222 = vmatpush.msra.mxu0 %v91
    %223 = vmatpush.msra.mxu0 %v90
    %224 = vmatpush.msra.mxu0 %v89
    %225 = vmatpush.msra.mxu0 %v88
    %226 = vmatpush.msra.mxu0 %v87
    %227 = vmatpush.msra.mxu0 %v86
    %228 = vmatpush.msra.mxu0 %v85
    %229 = vmatpush.msra.mxu0 %v84
    %230 = vmatpush.msra.mxu0 %v83
    %231 = vmatpush.msra.mxu0 %v82
    %232 = vmatpush.msra.mxu0 %v81
    %233 = vmatpush.msra.mxu0 %v80
    %234 = vmatpush.msra.mxu0 %v79
    %235 = vmatpush.msra.mxu0 %v78
    %236 = vmatpush.msra.mxu0 %v77
    %237 = vmatmul.f32.gmra.mxu0 %v24
    %v238 = vpop.f32.mrf.mxu0
    %v239 = vadd.f32 %v219, %v238
    %240 = vdwg.mxu0
    %241 = vmatpush.msra.mxu0 %v108
    %242 = vmatpush.msra.mxu0 %v107
    %243 = vmatpush.msra.mxu0 %v106
    %244 = vmatpush.msra.mxu0 %v105
    %245 = vmatpush.msra.mxu0 %v104
    %246 = vmatpush.msra.mxu0 %v103
    %247 = vmatpush.msra.mxu0 %v102
    %248 = vmatpush.msra.mxu0 %v101
    %249 = vmatpush.msra.mxu0 %v100
    %250 = vmatpush.msra.mxu0 %v99
    %251 = vmatpush.msra.mxu0 %v98
    %252 = vmatpush.msra.mxu0 %v97
    %253 = vmatpush.msra.mxu0 %v96
    %254 = vmatpush.msra.mxu0 %v95
    %255 = vmatpush.msra.mxu0 %v94
    %256 = vmatpush.msra.mxu0 %v93
    %257 = vmatmul.f32.gmra.mxu0 %v25
    %v258 = vpop.f32.mrf.mxu0
    %v259 = vadd.f32 %v239, %v258
    %260 = vdwg.mxu0
    %261 = vmatpush.msra.mxu0 %v124
    %262 = vmatpush.msra.mxu0 %v123
    %263 = vmatpush.msra.mxu0 %v122
    %264 = vmatpush.msra.mxu0 %v121
    %265 = vmatpush.msra.mxu0 %v120
    %266 = vmatpush.msra.mxu0 %v119
    %267 = vmatpush.msra.mxu0 %v118
    %268 = vmatpush.msra.mxu0 %v117
    %269 = vmatpush.msra.mxu0 %v116
    %270 = vmatpush.msra.mxu0 %v115
    %271 = vmatpush.msra.mxu0 %v114
    %272 = vmatpush.msra.mxu0 %v113
    %273 = vmatpush.msra.mxu0 %v112
    %274 = vmatpush.msra.mxu0 %v111
    %275 = vmatpush.msra.mxu0 %v110
    %276 = vmatpush.msra.mxu0 %v109
    %277 = vmatmul.f32.gmra.mxu0 %v26
    %v278 = vpop.f32.mrf.mxu0
    %v279 = vadd.f32 %v259, %v278
    %280 = vdwg.mxu0
    %281 = vmatpush.msra.mxu0 %v140
    %282 = vmatpush.msra.mxu0 %v139
    %283 = vmatpush.msra.mxu0 %v138
    %284 = vmatpush.msra.mxu0 %v137
    %285 = vmatpush.msra.mxu0 %v136
    %286 = vmatpush.msra.mxu0 %v135
    %287 = vmatpush.msra.mxu0 %v134
    %288 = vmatpush.msra.mxu0 %v133
    %289 = vmatpush.msra.mxu0 %v132
    %290 = vmatpush.msra.mxu0 %v131
    %291 = vmatpush.msra.mxu0 %v130
    %292 = vmatpush.msra.mxu0 %v129
    %293 = vmatpush.msra.mxu0 %v128
    %294 = vmatpush.msra.mxu0 %v127
    %295 = vmatpush.msra.mxu0 %v126
    %296 = vmatpush.msra.mxu0 %v125
    %297 = vmatmul.f32.gmra.mxu0 %v27
    %v298 = vpop.f32.mrf.mxu0
    %v299 = vadd.f32 %v279, %v298
    %300 = vdwg.mxu0
    %301 = vmatpush.msra.mxu0 %v156
    %302 = vmatpush.msra.mxu0 %v155
    %303 = vmatpush.msra.mxu0 %v154
    %304 = vmatpush.msra.mxu0 %v153
    %305 = vmatpush.msra.mxu0 %v152
    %306 = vmatpush.msra.mxu0 %v151
    %307 = vmatpush.msra.mxu0 %v150
    %308 = vmatpush.msra.mxu0 %v149
    %309 = vmatpush.msra.mxu0 %v148
    %310 = vmatpush.msra.mxu0 %v147
    %311 = vmatpush.msra.mxu0 %v146
    %312 = vmatpush.msra.mxu0 %v145
    %313 = vmatpush.msra.mxu0 %v144
    %314 = vmatpush.msra.mxu0 %v143
    %315 = vmatpush.msra.mxu0 %v142
    %316 = vmatpush.msra.mxu0 %v141
    %317 = vmatmul.f32.gmra.mxu0 %v28
    %v318 = vpop.f32.mrf.mxu0
    %v319 = vadd.f32 %v299, %v318
    %320 = vdwg.mxu0
    %v321 = vmax.f32 %v319, 0.0
    %v322 = vld [vmem:[%s3] sm:$0xff]
    %v323 = vld [vmem:[%s3 + $0x8] sm:$0xff]
    %v324 = vld [vmem:[%s3 + $0x10] sm:$0xff]
    %v325 = vld [vmem:[%s3 + $0x18] sm:$0xff]
    %v326 = vld [vmem:[%s4] sm:$0x1]
    %v328 = vperm.slane %v326, 0
    %vm330 = vcmask 261120
    %v332 = vsel %vm330, %v321, 0
    %334 = vmatpush.msra.mxu0 0.0
    %335 = vmatpush.msra.mxu0 0.0
    %336 = vmatpush.msra.mxu0 0.0
    %337 = vmatpush.msra.mxu0 0.0
    %338 = vmatpush.msra.mxu0 0.0
    %339 = vmatpush.msra.mxu0 0.0
    %340 = vmatpush.msra.mxu0 0.0
    %341 = vmatpush.msra.mxu0 0.0
    %342 = vmatpush.msra.mxu0 0.0
    %343 = vmatpush.msra.mxu0 0.0
    %344 = vmatpush.msra.mxu0 0.0
    %345 = vmatpush.msra.mxu0 0.0
    %346 = vmatpush.msra.mxu0 %v325
    %347 = vmatpush.msra.mxu0 %v324
    %348 = vmatpush.msra.mxu0 %v323
    %349 = vmatpush.msra.mxu0 %v322
    %350 = vmatmul.f32.gmra.mxu0 %v332
    %v351 = vpop.f32.mrf.mxu0
    %v352 = vadd.f32 %v328, %v351
    %353 = vdwg.mxu0
    %354 = vst [vmem:[#allocation2] sm:$0xff] %v352
    // Predicated region
    $region22: #{tpu_custom_call.1} parent=1 // pred_check
      _
    $region23: #{tpu_custom_call.1} parent=1 // pred_check_branch
      %356 = sbr.rel (0) target = $region25
    $region24: #{tpu_custom_call.1} parent=1 // pred_region
      %358 = vsyncadd [#allocation3], 0
      %s360 = sshll.u32 [#allocation2], 4
      %s361 = int_to_ptr.vmem [resolvable:$true] %s360
      %s362 = sshll.u32 %s5, 4
      %s363 = int_to_ptr.hbm [resolvable:$true] %s362
      %365 = dma.vmem_to_hbm [thread:$0]  %s361, 128, %s363, [#allocation3]
    $region25: #{tpu_custom_call.1} parent=1 // pred_fallthru
      _
    // Predicated region
    $region26: #{tpu_custom_call.1} parent=1 // pred_check
      _
    $region27: #{tpu_custom_call.1} parent=1 // pred_check_branch
      %367 = sbr.rel (0) target = $region29
    $region28: #{tpu_custom_call.1} parent=1 // pred_region
      %369 = dma.done [#allocation3], 128
    $region29: #{tpu_custom_call.1} parent=1 // pred_fallthru
      _
    %370 = vsyncpa [#allocation3], 1

</llo_original>
